<compile_context>
chip_gen: v7x
topology: tpu7x:2x2x1
jax: 0.10.0
libtpu: 0.0.40
codegen_flags: <defaults>
</compile_context>

<pallas_src>
import jax
import jax.numpy as jnp
from jax.experimental import pallas as pl
from jax.experimental.pallas import tpu as pltpu

IN_FEATURES = 16
OUT_FEATURES = 4
LAYER_NUM = 8

# params slab layout: rows [0,16) = W_eff (in,out); row 16 = b_eff; rows 17..23
# are zero padding so the slab is a clean multiple of 8 sublanes.
PARAM_ROWS = IN_FEATURES + 8  # 24

# Batch-tile size once the grid kicks in (multiple of 8 sublanes; large enough
# that the narrow 4-lane output stores amortize, small enough to never stress
# scoped VMEM on any generation).
MAX_BATCH_BLOCK = 256


def toy_model_kernel(x_ref, p_ref, o_ref):
    # x_ref: (TB, 16) f32 | p_ref: (24, 4) f32 (grid-invariant) | o_ref: (TB, 4) f32
    w = p_ref[0:IN_FEATURES, :]                    # (16, 4), static slice
    b = p_ref[IN_FEATURES:IN_FEATURES + 1, :]      # (1, 4),  static slice
    o_ref[...] = jnp.dot(x_ref[...], w, preferred_element_type=jnp.float32) + b


def fold_params(w0, b0, ws, bs):
    """One-time parameter preparation (NOT in the per-call hot path).

    w0: (OUT, IN)  b0: (OUT,)  ws: (L, OUT, OUT)  bs: (L, OUT)  -- PyTorch layout.
    Valid ONLY because ToyModel has no activation between Linear layers.
    Returns a (PARAM_ROWS, OUT) f32 slab: rows 0..15 = W_eff, row 16 = b_eff.
    """
    w_eff = jnp.transpose(w0).astype(jnp.float32)          # (IN, OUT)
    b_eff = b0.astype(jnp.float32).reshape(1, OUT_FEATURES)
    for i in range(LAYER_NUM):
        wt = jnp.transpose(ws[i]).astype(jnp.float32)      # (OUT, OUT)
        w_eff = w_eff @ wt
        b_eff = b_eff @ wt + bs[i].reshape(1, OUT_FEATURES)
    params = jnp.zeros((PARAM_ROWS, OUT_FEATURES), dtype=jnp.float32)
    params = params.at[0:IN_FEATURES, :].set(w_eff)
    params = params.at[IN_FEATURES, :].set(b_eff[0])
    return params


def _round_up(n, m):
    return ((n + m - 1) // m) * m


@jax.jit
def toy_model_forward(x, params):
    """x: (B, IN_FEATURES) f32; params: (PARAM_ROWS, OUT) f32 from fold_params."""
    B = x.shape[0]
    tb = min(MAX_BATCH_BLOCK, _round_up(B, 8))
    padded_b = _round_up(B, tb)
    if padded_b != B:
        x = jnp.pad(x, ((0, padded_b - B), (0, 0)))
    grid = (padded_b // tb,)
    out = pl.pallas_call(
        toy_model_kernel,
        out_shape=jax.ShapeDtypeStruct((padded_b, OUT_FEATURES), jnp.float32),
        grid=grid,
        in_specs=[
            # Batch-tiled activations.
            pl.BlockSpec((tb, IN_FEATURES), lambda i: (i, 0)),
            # Grid-invariant block index -> folded params DMA'd once, stay
            # resident in VMEM across every batch tile of this call.
            pl.BlockSpec((PARAM_ROWS, OUT_FEATURES), lambda i: (0, 0)),
        ],
        out_specs=pl.BlockSpec((tb, OUT_FEATURES), lambda i: (i, 0)),
        compiler_params=pltpu.CompilerParams(
            dimension_semantics=("parallel",)),  # v7x: split batch over 2 TCs
    )(x, params)
    return out[:B] if padded_b != B else out


def _reference_forward(x, w0, b0, ws, bs):
    # Layer-by-layer, matching the PyTorch ToyModel forward exactly.
    h = x @ w0.T + b0
    for i in range(LAYER_NUM):
        h = h @ ws[i].T + bs[i]
    return h


if __name__ == "__main__":
    key = jax.random.PRNGKey(0)
    k_x1, k_x2, k_w0, k_b0, k_ws, k_bs = jax.random.split(key, 6)

    # Deterministic parameter init (PyTorch-Linear-style uniform bounds).
    bound0 = 1.0 / jnp.sqrt(float(IN_FEATURES))
    w0 = jax.random.uniform(k_w0, (OUT_FEATURES, IN_FEATURES),
                            minval=-bound0, maxval=bound0, dtype=jnp.float32)
    b0 = jax.random.uniform(k_b0, (OUT_FEATURES,),
                            minval=-bound0, maxval=bound0, dtype=jnp.float32)
    bound = 1.0 / jnp.sqrt(float(OUT_FEATURES))
    ws = jax.random.uniform(k_ws, (LAYER_NUM, OUT_FEATURES, OUT_FEATURES),
                            minval=-bound, maxval=bound, dtype=jnp.float32)
    bs = jax.random.uniform(k_bs, (LAYER_NUM, OUT_FEATURES),
                            minval=-bound, maxval=bound, dtype=jnp.float32)

    # One-time parameter folding (outside the per-call hot path).
    params = jax.block_until_ready(fold_params(w0, b0, ws, bs))

    # Case 1: the module's natural tiny batch (ToyModel forward takes a tuple
    # `inputs` and uses inputs[0]; emulate that).
    x_small = jax.random.normal(k_x1, (8, IN_FEATURES), dtype=jnp.float32)
    labels = jnp.zeros((8, OUT_FEATURES), dtype=jnp.float32)  # unused, like PyTorch
    inputs = (x_small, labels)
    out_small = jax.block_until_ready(toy_model_forward(inputs[0], params))
    ref_small = _reference_forward(inputs[0], w0, b0, ws, bs)
    assert out_small.shape == (8, OUT_FEATURES)
    assert jnp.allclose(out_small, ref_small, atol=2e-5, rtol=2e-5)

    # Case 2: many micro-batches stacked into one slab -> single gridded call
    # (non-multiple-of-tile batch to exercise the pad/slice path and the
    # multi-step "parallel" grid with the resident params block).
    x_big = jax.random.normal(k_x2, (520, IN_FEATURES), dtype=jnp.float32)
    out_big = jax.block_until_ready(toy_model_forward(x_big, params))
    ref_big = _reference_forward(x_big, w0, b0, ws, bs)
    assert out_big.shape == (520, OUT_FEATURES)
    # Folding changes FP summation order slightly vs. the chained reference.
    assert jnp.allclose(out_big, ref_big, atol=2e-5, rtol=2e-5)

    print("KERNEL_OK")
</pallas_src>

<mosaic_0001>
module attributes {stable_mosaic.version = 11 : i64} {
  func.func @toy_model_kernel(%arg0: i32, %arg1: memref<8x16xf32, #tpu.memory_space<vmem>>, %arg2: memref<24x4xf32, #tpu.memory_space<vmem>>, %arg3: memref<8x4xf32, #tpu.memory_space<vmem>>) attributes {dimension_semantics = [#tpu.dimension_semantics<parallel>], iteration_bounds = array<i64: 1>, scalar_prefetch = 0 : i64, scratch_operands = 0 : i64, tpu.core_type = #tpu.core_type<tc>, window_params = [{transform_indices = @transform_0, window_bounds = array<i64: 8, 16>}, {pipeline_mode = #tpu.pipeline_mode<synchronous>, transform_indices = @transform_1, window_bounds = array<i64: 24, 4>}, {transform_indices = @transform_2, window_bounds = array<i64: 8, 4>}]} {
    %c0 = arith.constant 0 : index
    %c0_0 = arith.constant 0 : index
    %0 = vector.load %arg2[%c0, %c0_0] : memref<24x4xf32, #tpu.memory_space<vmem>>, vector<16x4xf32>
    %c16 = arith.constant 16 : index
    %c0_1 = arith.constant 0 : index
    %1 = vector.load %arg2[%c16, %c0_1] : memref<24x4xf32, #tpu.memory_space<vmem>>, vector<1x4xf32>
    %c0_2 = arith.constant 0 : index
    %c0_3 = arith.constant 0 : index
    %2 = vector.load %arg1[%c0_2, %c0_3] : memref<8x16xf32, #tpu.memory_space<vmem>>, vector<8x16xf32>
    %cst = arith.constant dense<0.000000e+00> : vector<8x4xf32>
    %3 = tpu.matmul %2, %0, %cst {dimension_numbers = #tpu.dot_dimension_numbers<[1], [0], [0], [1], [0, 0, 1, 1], [], []>} : vector<8x16xf32>, vector<16x4xf32>, vector<8x4xf32> -> vector<8x4xf32>
    %4 = vector.broadcast %1 : vector<1x4xf32> to vector<8x4xf32>
    %5 = arith.addf %3, %4 : vector<8x4xf32>
    %c0_4 = arith.constant 0 : index
    %c0_5 = arith.constant 0 : index
    %6 = vector.load %arg3[%c0_4, %c0_5] : memref<8x4xf32, #tpu.memory_space<vmem>>, vector<8x4xf32>
    tpu.vector_store %arg3[%c0_4, %c0_5], %5 {strides = array<i32>} : memref<8x4xf32, #tpu.memory_space<vmem>>, vector<8x4xf32>,
    return
  }
  func.func @transform_0(%arg0: i32) -> (i32, i32) {
    %c0_i32 = arith.constant 0 : i32
    %c0_i32_0 = arith.constant 0 : i32
    return %arg0, %c0_i32 : i32, i32
  }
  func.func @transform_1(%arg0: i32) -> (i32, i32) {
    %c0_i32 = arith.constant 0 : i32
    %c0_i32_0 = arith.constant 0 : i32
    %c0_i32_1 = arith.constant 0 : i32
    return %c0_i32, %c0_i32_0 : i32, i32
  }
  func.func @transform_2(%arg0: i32) -> (i32, i32) {
    %c0_i32 = arith.constant 0 : i32
    %c0_i32_0 = arith.constant 0 : i32
    return %arg0, %c0_i32 : i32, i32
  }
}

</mosaic_0001>

<llo_original>
// kernel: toy_model_forward.1
$region0: #{toy_model_forward.1}
  #allocation0 [shape = 'u32[]', space=smem, size = 0x4, offset = 0x4, fixed_abs, tag = 'smem constant byte address 0x4 - core index']
  #allocation1 [shape = 'u32[144,128]{1,0:T(1,128)}', space=vmem, size = 0x12000, scoped, tag = 'internal scratch']
  %s0 = inlined_call_operand.vmem [shape: f32[8,16], index: 0, kind: input, shape index: {}]
  %s1 = inlined_call_operand.vmem [shape: f32[24,4], index: 1, kind: input, shape index: {}]
  %s2 = inlined_call_operand.vmem [shape: f32[8,4], index: 2, kind: output, shape index: {}]
  %s3 = sld [smem:[#allocation0]]
  $region18: #{toy_model_forward.1} parent=0
    _
  %s5 = ssub.s32 1, %s3
  %s6 = scalar_select 0, %s5, %s3
  // Predicated region
  $region2: #{toy_model_forward.1} parent=0 // pred_check
    _
  $region3: #{toy_model_forward.1} parent=0 // pred_check_branch
    %8 = sbr.rel (0) target = $region5
  $region4: #{toy_model_forward.1} parent=0 // pred_region
    _
  $region5: #{toy_model_forward.1} parent=0 // pred_fallthru
    _
  // Predicated region
  $region6: #{toy_model_forward.1} parent=0 // pred_check
    _
  $region7: #{toy_model_forward.1} parent=0 // pred_check_branch
    %10 = sbr.rel (0) target = $region9
  $region8: #{toy_model_forward.1} parent=0 // pred_region
    _
  $region9: #{toy_model_forward.1} parent=0 // pred_fallthru
    _
  %v11 = vld [vmem:[%s1] sm:$0xff]
  %v12 = vld [vmem:[%s1 + $0x8] sm:$0xff]
  %v13 = vld [vmem:[%s1 + $0x10] sm:$0x1]
  %v14 = vld [vmem:[%s0] sm:$0xff]
  %v15 = vlaneseq
  %v16 = vshrl.u32 %v15, 7
  %v17 = vsub.s32 0, %v16
  %v18 = vrot.slane %v13, %v17
  %vm19 = vcmask 130048
  %v21 = vsel %vm19, %v14, 0
  %23 = vmatprep.subr.mxu0 0.0
  %24 = vmatpush1.msra.mxu0 %v11
  %25 = vmatprep.subr.mxu0 0.0
  %26 = vmatpush1.msra.mxu0 %v12
  %27 = vmatprep.subr.mxu0 0.0
  %28 = vmatpush1.msra.mxu0 0.0
  %29 = vmatprep.subr.mxu0 0.0
  %30 = vmatpush1.msra.mxu0 0.0
  %31 = vmatprep.subr.mxu0 0.0
  %32 = vmatpush1.msra.mxu0 0.0
  %33 = vmatprep.subr.mxu0 0.0
  %34 = vmatpush1.msra.mxu0 0.0
  %35 = vmatprep.subr.mxu0 0.0
  %36 = vmatpush1.msra.mxu0 0.0
  %37 = vmatprep.subr.mxu0 0.0
  %38 = vmatpush1.msra.mxu0 0.0
  %39 = vmatprep.subr.mxu0 0.0
  %40 = vmatpush1.msra.mxu0 0.0
  %41 = vmatprep.subr.mxu0 0.0
  %42 = vmatpush1.msra.mxu0 0.0
  %43 = vmatprep.subr.mxu0 0.0
  %44 = vmatpush1.msra.mxu0 0.0
  %45 = vmatprep.subr.mxu0 0.0
  %46 = vmatpush1.msra.mxu0 0.0
  %47 = vmatprep.subr.mxu0 0.0
  %48 = vmatpush1.msra.mxu0 0.0
  %49 = vmatprep.subr.mxu0 0.0
  %50 = vmatpush1.msra.mxu0 0.0
  %51 = vmatprep.subr.mxu0 0.0
  %52 = vmatpush1.msra.mxu0 0.0
  %53 = vmatprep.subr.mxu0 0.0
  %54 = vmatpush1.msra.mxu0 0.0
  %55 = vmatprep.subr.mxu0 0.0
  %56 = vmatpush1.msra.mxu0 0.0
  %57 = vmatprep.subr.mxu0 0.0
  %58 = vmatpush1.msra.mxu0 0.0
  %59 = vmatprep.subr.mxu0 0.0
  %60 = vmatpush1.msra.mxu0 0.0
  %61 = vmatprep.subr.mxu0 0.0
  %62 = vmatpush1.msra.mxu0 0.0
  %63 = vmatprep.subr.mxu0 0.0
  %64 = vmatpush1.msra.mxu0 0.0
  %65 = vmatprep.subr.mxu0 0.0
  %66 = vmatpush1.msra.mxu0 0.0
  %67 = vmatprep.subr.mxu0 0.0
  %68 = vmatpush1.msra.mxu0 0.0
  %69 = vmatprep.subr.mxu0 0.0
  %70 = vmatpush1.msra.mxu0 0.0
  %71 = vmatprep.subr.mxu0 0.0
  %72 = vmatpush1.msra.mxu0 0.0
  %73 = vmatprep.subr.mxu0 0.0
  %74 = vmatpush1.msra.mxu0 0.0
  %75 = vmatprep.subr.mxu0 0.0
  %76 = vmatpush1.msra.mxu0 0.0
  %77 = vmatprep.subr.mxu0 0.0
  %78 = vmatpush1.msra.mxu0 0.0
  %79 = vmatprep.subr.mxu0 0.0
  %80 = vmatpush1.msra.mxu0 0.0
  %81 = vmatprep.subr.mxu0 0.0
  %82 = vmatpush1.msra.mxu0 0.0
  %83 = vmatprep.subr.mxu0 0.0
  %84 = vmatpush1.msra.mxu0 0.0
  %85 = vmatprep.subr.mxu0 0.0
  %86 = vmatpush1.msra.mxu0 0.0
  %87 = vmatprep.mubr.f32.mxu0 0.0
  %88 = vmatmul.mubr.f32.gmra.mrb[0].mxu0 %v21
  %v89 = vpop.f32.mrb[0].mxu0
  %v90 = vadd.f32 %v18, %v89
  %v91 = vpop.f32.mrb[0].mxu0
  %92 = vdwg.mxu0
  %vm93 = vcmask 31744
  %94 = vst.msk [vmem:[%s2] sm:$0xff] %vm93, %v90
  // Predicated region
  $region10: #{toy_model_forward.1} parent=0 // pred_check
    _
  $region11: #{toy_model_forward.1} parent=0 // pred_check_branch
    %96 = sbr.rel (0) target = $region13
  $region12: #{toy_model_forward.1} parent=0 // pred_region
    _
  $region13: #{toy_model_forward.1} parent=0 // pred_fallthru
    _
  // Predicated region
  $region14: #{toy_model_forward.1} parent=0 // pred_check
    _
  $region15: #{toy_model_forward.1} parent=0 // pred_check_branch
    %98 = sbr.rel (0) target = $region17
  $region16: #{toy_model_forward.1} parent=0 // pred_region
    _
  $region17: #{toy_model_forward.1} parent=0 // pred_fallthru
    _

</llo_original>
